<compile_context>
chip_gen: v7x
topology: tpu7x:2x2x1
jax: 0.10.0
libtpu: 0.0.40
codegen_flags: <defaults>
</compile_context>

<pallas_src>
import numpy as np
import jax
import jax.numpy as jnp
from jax.experimental import pallas as pl
from jax.experimental.pallas import tpu as pltpu

# -------------------- model hyper-parameters (match the module) -------------
DEPTH = 5
GAMMA = 0.1
BN_EPS = 1e-5
N_FEATURES = 16
USED_FEATURES_RATE = 0.7
NUM_USED = int(N_FEATURES * USED_FEATURES_RATE)   # 11
N_LEAVES = 2 ** DEPTH                             # 32
ROUTE_WIDTH = DEPTH * N_LEAVES                    # 160
ROUTE_PAD = 256                                   # 2 x 128-lane MXU tiles (v5e-friendly)
BATCH = 8


# ----------------------------- Pallas kernel --------------------------------
def _ndt_kernel(x_ref, dec_ref, route_ref, out_ref):
    x = x_ref[...]                                                 # (B, F) f32

    # decision-layer slab: [w_fused(F,L) ; b(1,L) ; bn_w(1,L) ; bn_b(1,L)]
    w = dec_ref[0:N_FEATURES, :]                                   # (F, L)
    b = dec_ref[N_FEATURES:N_FEATURES + 1, :]                      # (1, L)
    bnw = dec_ref[N_FEATURES + 1:N_FEATURES + 2, :]                # (1, L)
    bnb = dec_ref[N_FEATURES + 2:N_FEATURES + 3, :]                # (1, L)

    # decision layer (feature selection already folded into w_fused)
    z = jnp.dot(x, w, preferred_element_type=jnp.float32) + b      # (B, L)

    # BatchNorm1d, training-mode batch statistics (biased variance), fused affine
    mean = jnp.mean(z, axis=0, keepdims=True)
    var = jnp.mean((z - mean) ** 2, axis=0, keepdims=True)
    scale = bnw * jax.lax.rsqrt(var + BN_EPS)                      # (1, L)
    shift = bnb - mean * scale                                     # (1, L)
    zhat = z * scale + shift                                       # (B, L)

    # smoothstep (elementwise, VPU/EUP)
    g = GAMMA
    s = (-2.0 / g ** 3) * zhat ** 3 + (3.0 / (2.0 * g)) * zhat + 0.5
    d = jnp.where(zhat <= -g / 2.0, 0.0, jnp.where(zhat >= g / 2.0, 1.0, s))  # (B, L)

    # tree routing: one wide matmul; pi is folded into the last level's columns
    # and the padded E lanes are 1.0, so the 5-level product collapses to an
    # aligned pairwise multiply + roll-tree product (whole-vreg XLU/VPU ops).
    c = route_ref[0:N_LEAVES, :]                                   # (L, 256)
    e = route_ref[N_LEAVES:N_LEAVES + 1, :]                        # (1, 256)
    a = jnp.dot(d, c, preferred_element_type=jnp.float32) + e      # (B, 256)

    p = a[:, 0:128] * a[:, 128:256]          # lanes: [a0*a4 | a1 | a2 | a3]
    p = p * pltpu.roll(p, shift=64, axis=1)  # pairs levels two apart
    p = p * pltpu.roll(p, shift=32, axis=1)  # every 32-lane group now holds mu
    mu = p[:, 0:N_LEAVES]                                          # (B, L), pi applied

    # outputs = sum_leaf mu*pi  (pi already folded) — lane reduction, no MXU
    out_ref[...] = jnp.sum(mu, axis=-1, keepdims=True)             # (B, 1)


def ndt_forward(x, dec_slab, route_slab):
    vmem = pl.BlockSpec(memory_space=pltpu.MemorySpace.VMEM)
    bsz = x.shape[0]
    flops = 2 * bsz * (N_FEATURES * N_LEAVES + N_LEAVES * ROUTE_PAD)
    bytes_accessed = 4 * (x.size + dec_slab.size + route_slab.size + bsz)
    return pl.pallas_call(
        _ndt_kernel,
        out_shape=jax.ShapeDtypeStruct((bsz, 1), jnp.float32),
        in_specs=[vmem, vmem, vmem],
        out_specs=vmem,
        cost_estimate=pl.CostEstimate(flops=flops, transcendentals=N_LEAVES,
                                      bytes_accessed=bytes_accessed),
    )(x, dec_slab, route_slab)


# --------------------- tree-topology selection constants --------------------
def build_routing_constants(depth, pad_to, pi):
    """Merged C_all (L, pad_to) and E_all (1, pad_to) such that for level k,
       (d @ C_all + E_all)[:, k*L:(k+1)*L] equals the torch level-k selected
       decision (d at the level node if the leaf's level-k bit is 0, else 1-d).
       pi[leaf] is folded into the last level's columns, and the padded lanes
       of E_all are 1.0 so they are multiplicative identities in the product."""
    L = 2 ** depth
    used = depth * L
    assert pad_to >= used
    C = np.zeros((L, pad_to), dtype=np.float32)
    E = np.zeros((1, pad_to), dtype=np.float32)
    E[0, used:] = 1.0                           # identity lanes for the pairwise product
    pi_np = np.asarray(pi, dtype=np.float32).reshape(L)
    for k in range(depth):
        for leaf in range(L):
            bit = (leaf >> (depth - 1 - k)) & 1    # 0 -> take d, 1 -> take 1-d
            prefix = leaf >> (depth - k)           # path bits above level k
            node = 2 ** k + prefix                 # index into the (B, L) decisions
            col = k * L + leaf
            w = pi_np[leaf] if k == depth - 1 else 1.0
            C[node, col] = w if bit == 0 else -w
            E[0, col] = float(bit) * w
    return jnp.asarray(C), jnp.asarray(E)


# ----------------------------- pure-JAX reference ----------------------------
def reference_forward(x, mask, w, b, bnw, bnb, pi):
    """Literal re-implementation of the torch forward (unfused, reshape/tile loop)."""
    xs = x @ mask
    z = xs @ w + b
    mean = z.mean(0, keepdims=True)
    var = ((z - mean) ** 2).mean(0, keepdims=True)
    zhat = (z - mean) / jnp.sqrt(var + BN_EPS) * bnw + bnb
    s = (-2.0 / GAMMA ** 3) * zhat ** 3 + (3.0 / (2.0 * GAMMA)) * zhat + 0.5
    d = jnp.where(zhat <= -GAMMA / 2, 0.0, jnp.where(zhat >= GAMMA / 2, 1.0, s))
    dec = jnp.stack([d, 1.0 - d], axis=2)          # (B, L, 2)
    bsz = x.shape[0]
    mu = jnp.ones((bsz, 1, 1), jnp.float32)
    begin, end = 1, 2
    for level in range(DEPTH):
        mu = mu.reshape(bsz, -1, 1)
        mu = jnp.tile(mu, (1, 1, 2))
        mu = mu * dec[:, begin:end, :]
        begin = end
        end = begin + 2 ** (level + 1)
    mu = mu.reshape(bsz, N_LEAVES)
    return mu @ pi


# ---------------------------------- main -------------------------------------
if __name__ == "__main__":
    key = jax.random.PRNGKey(0)
    k_idx, k_x, k_w, k_b, k_pi = jax.random.split(key, 5)

    # deterministic "sampled" feature subset (sorted), as in the module __init__
    perm = jax.random.permutation(k_idx, N_FEATURES)
    used_idx = jnp.sort(perm[:NUM_USED])
    used_features_mask = jnp.eye(N_FEATURES, dtype=jnp.float32)[:, used_idx]  # (F, U)

    # decision layer parameters (deterministic synthetic init), stored (in, out)
    w = jax.random.normal(k_w, (NUM_USED, N_LEAVES), jnp.float32) * 0.3       # (U, L)
    b = jax.random.normal(k_b, (1, N_LEAVES), jnp.float32) * 0.1              # (1, L)

    # BatchNorm1d affine params (PyTorch default init: weight=1, bias=0)
    bn_w = jnp.ones((1, N_LEAVES), jnp.float32)
    bn_b = jnp.zeros((1, N_LEAVES), jnp.float32)

    # pi: (L, 1) like torch.rand — folded into the routing constants
    pi = jax.random.uniform(k_pi, (N_LEAVES, 1), jnp.float32)

    # fold the 0/1 feature selector into the decision weights (exact in f32)
    w_fused = used_features_mask @ w                                          # (F, L)

    # single decision-layer slab: [w_fused ; b ; bn_w ; bn_b]  -> (F+3, L)
    dec_slab = jnp.concatenate([w_fused, b, bn_w, bn_b], axis=0)              # (19, 32)

    # merged routing constants (pi folded, pad lanes = identity), one slab
    C_all, E_all = build_routing_constants(DEPTH, ROUTE_PAD, pi)              # (32,256),(1,256)
    route_slab = jnp.concatenate([C_all, E_all], axis=0)                      # (33, 256)

    # input
    x = jax.random.normal(k_x, (BATCH, N_FEATURES), jnp.float32)

    out = ndt_forward(x, dec_slab, route_slab)
    out = jax.block_until_ready(out)

    ref = reference_forward(x, used_features_mask, w, b, bn_w, bn_b, pi)
    np.testing.assert_allclose(np.asarray(out), np.asarray(ref), rtol=1e-4, atol=1e-5)

    print("KERNEL_OK")
</pallas_src>

<mosaic_0001>
module attributes {stable_mosaic.version = 11 : i64} {
  func.func @_ndt_kernel(%arg0: memref<8x16xf32, #tpu.memory_space<vmem>>, %arg1: memref<19x32xf32, #tpu.memory_space<vmem>>, %arg2: memref<33x256xf32, #tpu.memory_space<vmem>>, %arg3: memref<8x1xf32, #tpu.memory_space<vmem>>) attributes {dimension_semantics = [], scalar_prefetch = 0 : i64, scratch_operands = 0 : i64, tpu.core_type = #tpu.core_type<tc>} {
    %c0 = arith.constant 0 : index
    %c0_0 = arith.constant 0 : index
    %0 = vector.load %arg0[%c0, %c0_0] : memref<8x16xf32, #tpu.memory_space<vmem>>, vector<8x16xf32>
    %c0_1 = arith.constant 0 : index
    %c0_2 = arith.constant 0 : index
    %1 = vector.load %arg1[%c0_1, %c0_2] : memref<19x32xf32, #tpu.memory_space<vmem>>, vector<16x32xf32>
    %c16 = arith.constant 16 : index
    %c0_3 = arith.constant 0 : index
    %2 = vector.load %arg1[%c16, %c0_3] : memref<19x32xf32, #tpu.memory_space<vmem>>, vector<1x32xf32>
    %c17 = arith.constant 17 : index
    %c0_4 = arith.constant 0 : index
    %3 = vector.load %arg1[%c17, %c0_4] : memref<19x32xf32, #tpu.memory_space<vmem>>, vector<1x32xf32>
    %c18 = arith.constant 18 : index
    %c0_5 = arith.constant 0 : index
    %4 = vector.load %arg1[%c18, %c0_5] : memref<19x32xf32, #tpu.memory_space<vmem>>, vector<1x32xf32>
    %cst = arith.constant dense<0.000000e+00> : vector<8x32xf32>
    %5 = tpu.matmul %0, %1, %cst {dimension_numbers = #tpu.dot_dimension_numbers<[1], [0], [0], [1], [0, 0, 1, 1], [], []>} : vector<8x16xf32>, vector<16x32xf32>, vector<8x32xf32> -> vector<8x32xf32>
    %6 = vector.broadcast %2 : vector<1x32xf32> to vector<8x32xf32>
    %7 = arith.addf %5, %6 : vector<8x32xf32>
    %cst_6 = arith.constant dense<0.000000e+00> : vector<32xf32>
    %8 = vector.multi_reduction <add>, %7, %cst_6 [0] : vector<8x32xf32> to vector<32xf32>
    %9 = vector.shape_cast %8 : vector<32xf32> to vector<1x32xf32>
    %cst_7 = arith.constant 8.000000e+00 : f32
    %10 = vector.broadcast %cst_7 : f32 to vector<1x32xf32>
    %11 = arith.divf %9, %10 : vector<1x32xf32>
    %12 = vector.broadcast %11 : vector<1x32xf32> to vector<8x32xf32>
    %13 = arith.subf %7, %12 : vector<8x32xf32>
    %14 = arith.mulf %13, %13 : vector<8x32xf32>
    %cst_8 = arith.constant dense<0.000000e+00> : vector<32xf32>
    %15 = vector.multi_reduction <add>, %14, %cst_8 [0] : vector<8x32xf32> to vector<32xf32>
    %16 = vector.shape_cast %15 : vector<32xf32> to vector<1x32xf32>
    %cst_9 = arith.constant 8.000000e+00 : f32
    %17 = vector.broadcast %cst_9 : f32 to vector<1x32xf32>
    %18 = arith.divf %16, %17 : vector<1x32xf32>
    %cst_10 = arith.constant 9.99999974E-6 : f32
    %19 = vector.broadcast %cst_10 : f32 to vector<1x32xf32>
    %20 = arith.addf %18, %19 : vector<1x32xf32>
    %21 = math.rsqrt %20 : vector<1x32xf32>
    %22 = arith.mulf %3, %21 : vector<1x32xf32>
    %23 = arith.mulf %11, %22 : vector<1x32xf32>
    %24 = arith.subf %4, %23 : vector<1x32xf32>
    %25 = vector.broadcast %22 : vector<1x32xf32> to vector<8x32xf32>
    %26 = arith.mulf %7, %25 : vector<8x32xf32>
    %27 = vector.broadcast %24 : vector<1x32xf32> to vector<8x32xf32>
    %28 = arith.addf %26, %27 : vector<8x32xf32>
    %29 = arith.mulf %28, %28 : vector<8x32xf32>
    %30 = arith.mulf %28, %29 : vector<8x32xf32>
    %cst_11 = arith.constant -2.000000e+03 : f32
    %31 = vector.broadcast %cst_11 : f32 to vector<8x32xf32>
    %32 = arith.mulf %31, %30 : vector<8x32xf32>
    %cst_12 = arith.constant 1.500000e+01 : f32
    %33 = vector.broadcast %cst_12 : f32 to vector<8x32xf32>
    %34 = arith.mulf %33, %28 : vector<8x32xf32>
    %35 = arith.addf %32, %34 : vector<8x32xf32>
    %cst_13 = arith.constant 5.000000e-01 : f32
    %36 = vector.broadcast %cst_13 : f32 to vector<8x32xf32>
    %37 = arith.addf %35, %36 : vector<8x32xf32>
    %cst_14 = arith.constant -5.000000e-02 : f32
    %38 = vector.broadcast %cst_14 : f32 to vector<8x32xf32>
    %39 = arith.cmpf ole, %28, %38 : vector<8x32xf32>
    %cst_15 = arith.constant 5.000000e-02 : f32
    %40 = vector.broadcast %cst_15 : f32 to vector<8x32xf32>
    %41 = arith.cmpf oge, %28, %40 : vector<8x32xf32>
    %cst_16 = arith.constant 1.000000e+00 : f32
    %42 = vector.broadcast %cst_16 : f32 to vector<8x32xf32>
    %43 = arith.select %41, %42, %37 : vector<8x32xi1>, vector<8x32xf32>
    %cst_17 = arith.constant 0.000000e+00 : f32
    %44 = vector.broadcast %cst_17 : f32 to vector<8x32xf32>
    %45 = arith.select %39, %44, %43 : vector<8x32xi1>, vector<8x32xf32>
    %c0_18 = arith.constant 0 : index
    %c0_19 = arith.constant 0 : index
    %46 = vector.load %arg2[%c0_18, %c0_19] : memref<33x256xf32, #tpu.memory_space<vmem>>, vector<32x256xf32>
    %c32 = arith.constant 32 : index
    %c0_20 = arith.constant 0 : index
    %47 = vector.load %arg2[%c32, %c0_20] : memref<33x256xf32, #tpu.memory_space<vmem>>, vector<1x256xf32>
    %cst_21 = arith.constant dense<0.000000e+00> : vector<8x256xf32>
    %48 = tpu.matmul %45, %46, %cst_21 {dimension_numbers = #tpu.dot_dimension_numbers<[1], [0], [0], [1], [0, 0, 1, 1], [], []>} : vector<8x32xf32>, vector<32x256xf32>, vector<8x256xf32> -> vector<8x256xf32>
    %49 = vector.broadcast %47 : vector<1x256xf32> to vector<8x256xf32>
    %50 = arith.addf %48, %49 : vector<8x256xf32>
    %51 = vector.extract_strided_slice %50 {offsets = [0, 0], sizes = [8, 128], strides = [1, 1]} : vector<8x256xf32> to vector<8x128xf32>
    %52 = vector.extract_strided_slice %50 {offsets = [0, 128], sizes = [8, 128], strides = [1, 1]} : vector<8x256xf32> to vector<8x128xf32>
    %53 = arith.mulf %51, %52 : vector<8x128xf32>
    %c64_i32 = arith.constant 64 : i32
    %54 = tpu.dynamic_rotate %53 by %c64_i32 dim 1 : vector<8x128xf32>, i32 -> vector<8x128xf32>
    %55 = arith.mulf %53, %54 : vector<8x128xf32>
    %c32_i32 = arith.constant 32 : i32
    %56 = tpu.dynamic_rotate %55 by %c32_i32 dim 1 : vector<8x128xf32>, i32 -> vector<8x128xf32>
    %57 = arith.mulf %55, %56 : vector<8x128xf32>
    %58 = vector.extract_strided_slice %57 {offsets = [0, 0], sizes = [8, 32], strides = [1, 1]} : vector<8x128xf32> to vector<8x32xf32>
    %cst_22 = arith.constant dense<0.000000e+00> : vector<8xf32>
    %59 = vector.multi_reduction <add>, %58, %cst_22 [1] : vector<8x32xf32> to vector<8xf32>
    %60 = vector.shape_cast %59 : vector<8xf32> to vector<8x1xf32>
    %c0_23 = arith.constant 0 : index
    %c0_24 = arith.constant 0 : index
    %61 = vector.load %arg3[%c0_23, %c0_24] : memref<8x1xf32, #tpu.memory_space<vmem>>, vector<8x1xf32>
    tpu.vector_store %arg3[%c0_23, %c0_24], %60 {strides = array<i32>} : memref<8x1xf32, #tpu.memory_space<vmem>>, vector<8x1xf32>,
    return
  }
}

</mosaic_0001>

<llo_original>
// kernel: tpu_custom_call.1
$region0: #{tpu_custom_call.1}
  #allocation0 [shape = 'u32[]', space=smem, size = 0x4, offset = 0x4, fixed_abs, tag = 'smem constant byte address 0x4 - core index']
  #allocation1 [shape = 'u32[144,128]{1,0:T(1,128)}', space=vmem, size = 0x12000, scoped, tag = 'internal scratch']
  %s0 = inlined_call_operand.hbm [shape: f32[8,16], index: 0, kind: input, shape index: {}]
  %s1 = inlined_call_operand.hbm [shape: f32[19,32], index: 1, kind: input, shape index: {}]
  %s2 = inlined_call_operand.hbm [shape: f32[33,256], index: 2, kind: input, shape index: {}]
  %s3 = inlined_call_operand.vmem [shape: f32[8,1], index: 3, kind: output, shape index: {}]
  %s4 = sld [smem:[#allocation0]]
  $region34: #{tpu_custom_call.1} parent=0
    _
  %s6 = ssub.s32 1, %s4
  %s7 = scalar_select 0, %s6, %s4
  $region1: #{tpu_custom_call.1} parent=0
    #allocation2 [shape = 'u8[4096]{0}', space=vmem, size = 0x1000, scoped, tag = 'input window, operand 0, single buffered']
    #allocation3 [shape = 's32[1]{0}', space=sflag, size = 0x4, scoped, tag = 'scoped memory for tpu_custom_call.1']
    #allocation4 [shape = 'u8[12288]{0}', space=vmem, size = 0x3000, scoped, tag = 'input window, operand 1, single buffered']
    #allocation5 [shape = 's32[1]{0}', space=sflag, size = 0x4, scoped, tag = 'scoped memory for tpu_custom_call.1']
    #allocation6 [shape = 'u8[40960]{0}', space=vmem, size = 0xa000, scoped, tag = 'input window, operand 2, single buffered']
    %8 = vsyncpa [#allocation3], 0
    %9 = vsyncpa [#allocation5], 0
    // Predicated region
    $region2: #{tpu_custom_call.1} parent=1 // pred_check
      _
    $region3: #{tpu_custom_call.1} parent=1 // pred_check_branch
      %11 = sbr.rel (0) target = $region5
    $region4: #{tpu_custom_call.1} parent=1 // pred_region
      %s13 = ssub.s32 128, 128
      %14 = vsyncadd [#allocation3], %s13
      %s16 = sshll.u32 [#allocation2], 4
      %s17 = int_to_ptr.vmem [resolvable:$true] %s16
      %19 = dma.hbm_to_vmem [thread:$0]  %s0, 128, %s17, [#allocation3]
    $region5: #{tpu_custom_call.1} parent=1 // pred_fallthru
      _
    // Predicated region
    $region6: #{tpu_custom_call.1} parent=1 // pred_check
      _
    $region7: #{tpu_custom_call.1} parent=1 // pred_check_branch
      %21 = sbr.rel (0) target = $region9
    $region8: #{tpu_custom_call.1} parent=1 // pred_region
      %s23 = ssub.s32 384, 384
      %24 = vsyncadd [#allocation5], %s23
      %s25 = sshll.u32 [#allocation4], 4
      %s26 = int_to_ptr.vmem [resolvable:$true] %s25
      %31 = dma.hbm_to_vmem [thread:$0]  %s1, 384, %s26, [#allocation5], 128, 128, 8
    $region9: #{tpu_custom_call.1} parent=1 // pred_fallthru
      _
    // Predicated region
    $region10: #{tpu_custom_call.1} parent=1 // pred_check
      _
    $region11: #{tpu_custom_call.1} parent=1 // pred_check_branch
      %33 = sbr.rel (0) target = $region13
    $region12: #{tpu_custom_call.1} parent=1 // pred_region
      %s35 = ssub.s32 1280, 1280
      %36 = vsyncadd [#allocation5], %s35
      %s37 = sshll.u32 [#allocation6], 4
      %s38 = int_to_ptr.vmem [resolvable:$true] %s37
      %43 = dma.hbm_to_vmem [thread:$0]  %s2, 1280, %s38, [#allocation5], 256, 256, 16
    $region13: #{tpu_custom_call.1} parent=1 // pred_fallthru
      _
    // Predicated region
    $region14: #{tpu_custom_call.1} parent=1 // pred_check
      _
    $region15: #{tpu_custom_call.1} parent=1 // pred_check_branch
      %45 = sbr.rel (0) target = $region17
    $region16: #{tpu_custom_call.1} parent=1 // pred_region
      %46 = dma.done [#allocation3], 128
    $region17: #{tpu_custom_call.1} parent=1 // pred_fallthru
      _
    // Predicated region
    $region18: #{tpu_custom_call.1} parent=1 // pred_check
      _
    $region19: #{tpu_custom_call.1} parent=1 // pred_check_branch
      %48 = sbr.rel (0) target = $region21
    $region20: #{tpu_custom_call.1} parent=1 // pred_region
      %49 = dma.done [#allocation5], 384
    $region21: #{tpu_custom_call.1} parent=1 // pred_fallthru
      _
    // Predicated region
    $region22: #{tpu_custom_call.1} parent=1 // pred_check
      _
    $region23: #{tpu_custom_call.1} parent=1 // pred_check_branch
      %51 = sbr.rel (0) target = $region25
    $region24: #{tpu_custom_call.1} parent=1 // pred_region
      %52 = dma.done [#allocation5], 1280
    $region25: #{tpu_custom_call.1} parent=1 // pred_fallthru
      _
    %v53 = vld [vmem:[#allocation2] sm:$0xff]
    %v54 = vld [vmem:[#allocation4] sm:$0xff]
    %v55 = vld [vmem:[#allocation4 + $0x8] sm:$0xff]
    %v56 = vld [vmem:[#allocation4 + $0x10] sm:$0x1]
    %v57 = vld [vmem:[#allocation4 + $0x11] sm:$0x1]
    %v58 = vld [vmem:[#allocation4 + $0x12] sm:$0x1]
    %v59 = vlaneseq
    %v60 = vshrl.u32 %v59, 7
    %v61 = vsub.s32 0, %v60
    %v62 = vrot.slane %v56, %v61
    %vm63 = vcmask 130048
    %v65 = vsel %vm63, %v53, 0
    %67 = vmatprep.subr.mxu0 0.0
    %68 = vmatpush1.msra.mxu0 %v54
    %69 = vmatprep.subr.mxu0 0.0
    %70 = vmatpush1.msra.mxu0 %v55
    %71 = vmatprep.subr.mxu0 0.0
    %72 = vmatpush1.msra.mxu0 0.0
    %73 = vmatprep.subr.mxu0 0.0
    %74 = vmatpush1.msra.mxu0 0.0
    %75 = vmatprep.subr.mxu0 0.0
    %76 = vmatpush1.msra.mxu0 0.0
    %77 = vmatprep.subr.mxu0 0.0
    %78 = vmatpush1.msra.mxu0 0.0
    %79 = vmatprep.subr.mxu0 0.0
    %80 = vmatpush1.msra.mxu0 0.0
    %81 = vmatprep.subr.mxu0 0.0
    %82 = vmatpush1.msra.mxu0 0.0
    %83 = vmatprep.subr.mxu0 0.0
    %84 = vmatpush1.msra.mxu0 0.0
    %85 = vmatprep.subr.mxu0 0.0
    %86 = vmatpush1.msra.mxu0 0.0
    %87 = vmatprep.subr.mxu0 0.0
    %88 = vmatpush1.msra.mxu0 0.0
    %89 = vmatprep.subr.mxu0 0.0
    %90 = vmatpush1.msra.mxu0 0.0
    %91 = vmatprep.subr.mxu0 0.0
    %92 = vmatpush1.msra.mxu0 0.0
    %93 = vmatprep.subr.mxu0 0.0
    %94 = vmatpush1.msra.mxu0 0.0
    %95 = vmatprep.subr.mxu0 0.0
    %96 = vmatpush1.msra.mxu0 0.0
    %97 = vmatprep.subr.mxu0 0.0
    %98 = vmatpush1.msra.mxu0 0.0
    %99 = vmatprep.subr.mxu0 0.0
    %100 = vmatpush1.msra.mxu0 0.0
    %101 = vmatprep.subr.mxu0 0.0
    %102 = vmatpush1.msra.mxu0 0.0
    %103 = vmatprep.subr.mxu0 0.0
    %104 = vmatpush1.msra.mxu0 0.0
    %105 = vmatprep.subr.mxu0 0.0
    %106 = vmatpush1.msra.mxu0 0.0
    %107 = vmatprep.subr.mxu0 0.0
    %108 = vmatpush1.msra.mxu0 0.0
    %109 = vmatprep.subr.mxu0 0.0
    %110 = vmatpush1.msra.mxu0 0.0
    %111 = vmatprep.subr.mxu0 0.0
    %112 = vmatpush1.msra.mxu0 0.0
    %113 = vmatprep.subr.mxu0 0.0
    %114 = vmatpush1.msra.mxu0 0.0
    %115 = vmatprep.subr.mxu0 0.0
    %116 = vmatpush1.msra.mxu0 0.0
    %117 = vmatprep.subr.mxu0 0.0
    %118 = vmatpush1.msra.mxu0 0.0
    %119 = vmatprep.subr.mxu0 0.0
    %120 = vmatpush1.msra.mxu0 0.0
    %121 = vmatprep.subr.mxu0 0.0
    %122 = vmatpush1.msra.mxu0 0.0
    %123 = vmatprep.subr.mxu0 0.0
    %124 = vmatpush1.msra.mxu0 0.0
    %125 = vmatprep.subr.mxu0 0.0
    %126 = vmatpush1.msra.mxu0 0.0
    %127 = vmatprep.subr.mxu0 0.0
    %128 = vmatpush1.msra.mxu0 0.0
    %129 = vmatprep.subr.mxu0 0.0
    %130 = vmatpush1.msra.mxu0 0.0
    %131 = vmatprep.mubr.f32.mxu0 0.0
    %132 = vmatmul.mubr.f32.gmra.mrb[0].mxu0 %v65
    %v133 = vpop.f32.mrb[0].mxu0
    %v134 = vadd.f32 %v62, %v133
    %v135 = vpop.f32.mrb[0].mxu0
    %136 = vdwg.mxu0
    %vm137 = vcmask 261120
    %v138 = vsel %vm137, %v134, 0.0
    %v139 = vrot.slane %v138, 4
    %v140 = vadd.f32 %v138, %v139
    %v141 = vrot.slane %v140, 2
    %v142 = vadd.f32 %v140, %v141
    %v143 = vrot.slane %v142, 1
    %v144 = vadd.f32 %v142, %v143
    %v145 = vrcp.pop 8.0
    %v146 = vmul.f32 %v144, %v145
    %v147 = vsub.f32 %v134, %v146
    %v148 = vmul.f32 %v147, %v147
    %v149 = vsel %vm137, %v148, 0.0
    %v150 = vrot.slane %v149, 4
    %v151 = vadd.f32 %v149, %v150
    %v152 = vrot.slane %v151, 2
    %v153 = vadd.f32 %v151, %v152
    %v154 = vrot.slane %v153, 1
    %v155 = vadd.f32 %v153, %v154
    %v156 = vmul.f32 %v155, %v145
    %v157 = vadd.f32 %v156, 1e-05
    %v158 = vrsqrt.pop %v157
    %v159 = vmul.f32 %v57, %v158
    %v160 = vmul.f32 %v146, %v159
    %v161 = vsub.f32 %v58, %v160
    %v162 = vlaneseq
    %v163 = vshrl.u32 %v162, 7
    %v164 = vsub.s32 0, %v163
    %v165 = vrot.slane %v159, %v164
    %v166 = vmul.f32 %v134, %v165
    %v167 = vlaneseq
    %v168 = vshrl.u32 %v167, 7
    %v169 = vsub.s32 0, %v168
    %v170 = vrot.slane %v161, %v169
    %v171 = vadd.f32 %v166, %v170
    %v172 = vmul.f32 %v171, %v171
    %v173 = vmul.f32 %v171, %v172
    %v174 = vmul.f32 %v173, -2000.0
    %v175 = vmul.f32 %v171, 15.0
    %v176 = vadd.f32 %v174, %v175
    %v177 = vadd.f32 %v176, 0.5
    %vm178 = vcmp.le.f32.partialorder %v171, -0.05
    %vm179 = vcmp.ge.f32.partialorder %v171, 0.05
    %v180 = vsel %vm179, 1.0, %v177
    %v181 = vsel %vm178, 0.0, %v180
    %v182 = vld [vmem:[#allocation6] sm:$0xff]
    %v183 = vld [vmem:[#allocation6 + $0x8] sm:$0xff]
    %v184 = vld [vmem:[#allocation6 + $0x10] sm:$0xff]
    %v185 = vld [vmem:[#allocation6 + $0x18] sm:$0xff]
    %v186 = vld [vmem:[#allocation6 + $0x20] sm:$0xff]
    %v187 = vld [vmem:[#allocation6 + $0x28] sm:$0xff]
    %v188 = vld [vmem:[#allocation6 + $0x30] sm:$0xff]
    %v189 = vld [vmem:[#allocation6 + $0x38] sm:$0xff]
    %s190 = scalar_lea.vmem [#allocation6], 64
    %v191 = vld [vmem:[%s190] ss:$8 sm:$0x3]
    %v193 = vlaneseq
    %v194 = vshrl.u32 %v193, 7
    %v195 = vsub.s32 0, %v194
    %v196 = vrot.slane %v191, %v195
    %v197 = vlaneseq
    %v198 = vshrl.u32 %v197, 7
    %v199 = vsub.s32 1, %v198
    %v200 = vrot.slane %v191, %v199
    %v204 = vsel %vm137, %v181, 0
    %206 = vmatprep.subr.mxu0 %v183
    %207 = vmatpush1.msra.mxu0 %v182
    %208 = vmatprep.subr.mxu0 %v185
    %209 = vmatpush1.msra.mxu0 %v184
    %210 = vmatprep.subr.mxu0 %v187
    %211 = vmatpush1.msra.mxu0 %v186
    %212 = vmatprep.subr.mxu0 %v189
    %213 = vmatpush1.msra.mxu0 %v188
    %214 = vmatprep.subr.mxu0 0.0
    %215 = vmatpush1.msra.mxu0 0.0
    %216 = vmatprep.subr.mxu0 0.0
    %217 = vmatpush1.msra.mxu0 0.0
    %218 = vmatprep.subr.mxu0 0.0
    %219 = vmatpush1.msra.mxu0 0.0
    %220 = vmatprep.subr.mxu0 0.0
    %221 = vmatpush1.msra.mxu0 0.0
    %222 = vmatprep.subr.mxu0 0.0
    %223 = vmatpush1.msra.mxu0 0.0
    %224 = vmatprep.subr.mxu0 0.0
    %225 = vmatpush1.msra.mxu0 0.0
    %226 = vmatprep.subr.mxu0 0.0
    %227 = vmatpush1.msra.mxu0 0.0
    %228 = vmatprep.subr.mxu0 0.0
    %229 = vmatpush1.msra.mxu0 0.0
    %230 = vmatprep.subr.mxu0 0.0
    %231 = vmatpush1.msra.mxu0 0.0
    %232 = vmatprep.subr.mxu0 0.0
    %233 = vmatpush1.msra.mxu0 0.0
    %234 = vmatprep.subr.mxu0 0.0
    %235 = vmatpush1.msra.mxu0 0.0
    %236 = vmatprep.subr.mxu0 0.0
    %237 = vmatpush1.msra.mxu0 0.0
    %238 = vmatprep.subr.mxu0 0.0
    %239 = vmatpush1.msra.mxu0 0.0
    %240 = vmatprep.subr.mxu0 0.0
    %241 = vmatpush1.msra.mxu0 0.0
    %242 = vmatprep.subr.mxu0 0.0
    %243 = vmatpush1.msra.mxu0 0.0
    %244 = vmatprep.subr.mxu0 0.0
    %245 = vmatpush1.msra.mxu0 0.0
    %246 = vmatprep.subr.mxu0 0.0
    %247 = vmatpush1.msra.mxu0 0.0
    %248 = vmatprep.subr.mxu0 0.0
    %249 = vmatpush1.msra.mxu0 0.0
    %250 = vmatprep.subr.mxu0 0.0
    %251 = vmatpush1.msra.mxu0 0.0
    %252 = vmatprep.subr.mxu0 0.0
    %253 = vmatpush1.msra.mxu0 0.0
    %254 = vmatprep.subr.mxu0 0.0
    %255 = vmatpush1.msra.mxu0 0.0
    %256 = vmatprep.subr.mxu0 0.0
    %257 = vmatpush1.msra.mxu0 0.0
    %258 = vmatprep.subr.mxu0 0.0
    %259 = vmatpush1.msra.mxu0 0.0
    %260 = vmatprep.subr.mxu0 0.0
    %261 = vmatpush1.msra.mxu0 0.0
    %262 = vmatprep.subr.mxu0 0.0
    %263 = vmatpush1.msra.mxu0 0.0
    %264 = vmatprep.subr.mxu0 0.0
    %265 = vmatpush1.msra.mxu0 0.0
    %266 = vmatprep.subr.mxu0 0.0
    %267 = vmatpush1.msra.mxu0 0.0
    %268 = vmatprep.subr.mxu0 0.0
    %269 = vmatpush1.msra.mxu0 0.0
    %270 = vmatprep.mubr.f32.mxu0 0.0
    %271 = vmatmul.mubr.f32.gmra.mrb[0].mxu0 %v204
    %v272 = vpop.f32.mrb[0].mxu0
    %v273 = vadd.f32 %v196, %v272
    %v274 = vpop.f32.mrb[0].mxu0
    %v275 = vadd.f32 %v200, %v274
    %276 = vdwg.mxu0
    %v277 = vmul.f32 %v273, %v275
    %278 = vrot.lane.b32.xlu0 %v277, 64
    %v279 = vpop.permute.xlu0 %278
    %v280 = vmul.f32 %v277, %v279
    %281 = vrot.lane.b32.xlu0 %v280, 32
    %v282 = vpop.permute.xlu0 %281
    %v283 = vmul.f32 %v280, %v282
    %v284 = vsel %vm137, %v283, 0.0
    %285 = vadd.xlane.f32.xlu0 %v284
    %v286 = vpop.xlane.xlu0 %285
    %vm287 = vcmask 7168
    %288 = vst.msk [vmem:[%s3] sm:$0xff] %vm287, %v286
    // Predicated region
    $region26: #{tpu_custom_call.1} parent=1 // pred_check
      _
    $region27: #{tpu_custom_call.1} parent=1 // pred_check_branch
      %290 = sbr.rel (0) target = $region29
    $region28: #{tpu_custom_call.1} parent=1 // pred_region
      _
    $region29: #{tpu_custom_call.1} parent=1 // pred_fallthru
      _
    // Predicated region
    $region30: #{tpu_custom_call.1} parent=1 // pred_check
      _
    $region31: #{tpu_custom_call.1} parent=1 // pred_check_branch
      %292 = sbr.rel (0) target = $region33
    $region32: #{tpu_custom_call.1} parent=1 // pred_region
      _
    $region33: #{tpu_custom_call.1} parent=1 // pred_fallthru
      _
    %293 = vsyncpa [#allocation3], 1
    %294 = vsyncpa [#allocation5], 1

</llo_original>
